<compile_context>
chip_gen: v7x
topology: tpu7x:2x2x1
jax: 0.10.0
libtpu: 0.0.40
codegen_flags: <defaults>
</compile_context>

<pallas_src>
import functools

import jax
import jax.numpy as jnp
from jax.experimental import pallas as pl
from jax.experimental.pallas import tpu as pltpu


# ----------------------------------------------------------------------------
# Fused kernel: BN(folded) + ReLU -> 3x3/s2 pool (sums) -> 1x1 conv (weight pre-scaled by 1/9)
# ----------------------------------------------------------------------------
def _fused_kernel(x_ref, scale2_ref, shift2_ref, w_ref, o_ref, carry_ref):
    # x_ref:      (1, TH, Wo, 2*Cin)  bf16 — TH = 2*THo image rows; adjacent W columns are
    #                                        paired into the lane dim (even | odd).
    # scale2_ref: (1, 1, 2*Cin)       f32  — folded BN scale, tiled twice over the lane dim
    # shift2_ref: (1, 1, 2*Cin)       f32
    # w_ref:      (Cin, Cout)         bf16 — 1x1 conv weight, pre-scaled by 1/9
    # o_ref:      (1, THo*Wo, Cout)   bf16 — pooled+projected output tile (flattened rows)
    # carry_ref:  (1, Wo, Cin)        f32 scratch — W-pooled last odd row of previous tile
    t = pl.program_id(1)
    _, TH, Wo, C2 = x_ref.shape
    Cin = C2 // 2
    THo = TH // 2

    # ---- BatchNorm (folded) + ReLU: f32 elementwise on the bf16 block ----
    x = x_ref[0].astype(jnp.float32)                                  # (TH, Wo, 2*Cin)
    h = jnp.maximum(x * scale2_ref[...] + shift2_ref[...], 0.0)

    # ---- pool along W: even/odd columns are lane slices (no strided sublane gathers) ----
    even_w = h[:, :, :Cin]                                            # cols 2j
    odd_w = h[:, :, Cin:]                                             # cols 2j+1
    if Wo > 1:
        # cols 2j-1: odd columns shifted right by one output column; j == 0 hits the
        # left zero padding.  Single full-tile expression, no partial stores.
        prev_w = jnp.concatenate(
            [jnp.zeros_like(odd_w[:, :1, :]), odd_w[:, :Wo - 1, :]], axis=1)
    else:
        prev_w = jnp.zeros_like(odd_w)
    ws = even_w + odd_w + prev_w                                      # (TH, Wo, Cin)

    # ---- pool along H: split row pairs on the un-tiled major dim (free reshape) ----
    ws4 = ws.reshape(THo, 2, Wo, Cin)
    even_h = ws4[:, 0]                                                # rows 2i
    odd_h = ws4[:, 1]                                                 # rows 2i+1

    @pl.when(t == 0)
    def _():
        carry_ref[...] = jnp.zeros_like(carry_ref)                    # top zero-padding row

    if THo > 1:
        # rows 2i-1: previous odd rows; row 0 of the tile takes the halo carried from
        # the previous row tile (or the zero padding at t == 0).
        prev_h = jnp.concatenate([carry_ref[...], odd_h[:THo - 1]], axis=0)
    else:
        prev_h = carry_ref[...]
    pooled = even_h + odd_h + prev_h                                  # (THo, Wo, Cin) pool *sums*

    # Halo for the next row tile: W-pooled last odd image row of this tile.
    carry_ref[...] = odd_h[THo - 1:THo]

    # ---- 1x1 conv as a channel matmul on the MXU (bf16 operands, f32 accumulation).
    #      Dropout2d is identity in eval mode; the 1/9 pool divisor is folded into w. ----
    lhs = pooled.reshape(THo * Wo, Cin).astype(w_ref.dtype)
    y = jnp.dot(lhs, w_ref[...], preferred_element_type=jnp.float32)  # (THo*Wo, Cout)
    o_ref[0] = y.astype(o_ref.dtype)


# ----------------------------------------------------------------------------
# Generation-aware VMEM budget / row-tile picker
# ----------------------------------------------------------------------------
def _vmem_capacity_bytes(default=64 * 1024 * 1024):
    try:
        info = pltpu.get_tpu_info()
        cap = getattr(info, "vmem_capacity_bytes", None)
        if cap:
            return int(cap)
    except Exception:
        pass
    return default


def _pick_tile_ho(Ho, Wo, Cin, Cout, budget_bytes):
    """Largest divisor of Ho that fits the budget and keeps the output block 8-aligned."""
    # Rough per-output-row VMEM bytes: bf16 x block (double-buffered) + f32 pooling
    # temporaries + bf16 output block (double-buffered), with slack for the compiler.
    per_row = 2 * Wo * (48 * Cin + 12 * Cout) + 1024
    cap = max(1, budget_bytes // per_row)
    best = None
    for d in range(1, Ho + 1):
        if Ho % d:
            continue
        if d != Ho and (d * Wo) % 8 != 0:      # (8,128) rule on the (THo*Wo, Cout) out block
            continue
        if d <= cap:
            best = d
    return best if best is not None else Ho


# ----------------------------------------------------------------------------
# Preferred entry point: NHWC in -> NHWC out (bf16), no layout transposes anywhere.
# ----------------------------------------------------------------------------
@functools.partial(jax.jit, static_argnames=("tile_ho", "out_dtype"))
def downsampling_block_nhwc(x_nhwc, gamma, beta, running_mean, running_var,
                            conv_w, *, eps=1e-5, tile_ho=None, out_dtype=jnp.bfloat16):
    N, H, W, Cin = x_nhwc.shape
    Cout = conv_w.shape[0]
    assert H % 2 == 0 and W % 2 == 0, "even spatial dims assumed (DenseNet transitions)"
    Ho, Wo = H // 2, W // 2

    # Fold BatchNorm (eval mode) into per-channel scale/shift; tile twice for the
    # (even | odd) column pairing of the lane dim.
    scale = (gamma.astype(jnp.float32) /
             jnp.sqrt(running_var.astype(jnp.float32) + eps))
    shift = beta.astype(jnp.float32) - running_mean.astype(jnp.float32) * scale
    scale2 = jnp.concatenate([scale, scale]).reshape(1, 1, 2 * Cin)
    shift2 = jnp.concatenate([shift, shift]).reshape(1, 1, 2 * Cin)

    # 1x1 conv weight (Cout, Cin, 1, 1) -> (Cin, Cout); fold the AvgPool 1/9 divisor in;
    # bf16 for the MXU (f32 accumulation).
    w_mat = (jnp.transpose(conv_w[:, :, 0, 0], (1, 0)).astype(jnp.float32)
             / 9.0).astype(jnp.bfloat16)

    # Generation-aware VMEM limit (~48 MiB on v7x, ~96 MiB on v5e/v6e) and tile budget.
    vmem_limit = int(min(_vmem_capacity_bytes() * 3 // 4, 96 * 1024 * 1024))
    THo = tile_ho if tile_ho is not None else _pick_tile_ho(Ho, Wo, Cin, Cout, vmem_limit // 3)
    assert Ho % THo == 0, "tile_ho must divide Ho"
    assert THo == Ho or (THo * Wo) % 8 == 0, "row tile must keep an 8-aligned output block"
    TH = 2 * THo                     # input image rows per grid step
    T = Ho // THo                    # row tiles

    # bf16 HBM input; pair adjacent W columns into the lane dim (pure metadata reshape).
    xb = x_nhwc if x_nhwc.dtype == jnp.bfloat16 else x_nhwc.astype(jnp.bfloat16)
    xb = xb.reshape(N, H, Wo, 2 * Cin)

    out = pl.pallas_call(
        _fused_kernel,
        out_shape=jax.ShapeDtypeStruct((N, Ho * Wo, Cout), out_dtype),
        grid_spec=pltpu.PrefetchScalarGridSpec(
            num_scalar_prefetch=0,
            grid=(N, T),
            in_specs=[
                pl.BlockSpec((1, TH, Wo, 2 * Cin), lambda n, t: (n, t, 0, 0)),
                pl.BlockSpec((1, 1, 2 * Cin), lambda n, t: (0, 0, 0)),
                pl.BlockSpec((1, 1, 2 * Cin), lambda n, t: (0, 0, 0)),
                pl.BlockSpec((Cin, Cout), lambda n, t: (0, 0)),
            ],
            out_specs=pl.BlockSpec((1, THo * Wo, Cout), lambda n, t: (n, t, 0)),
            scratch_shapes=[
                pltpu.VMEM((1, Wo, Cin), jnp.float32),   # H halo carry (W-pooled odd row)
            ],
        ),
        compiler_params=pltpu.CompilerParams(
            dimension_semantics=("parallel", "arbitrary"),  # batch shards across v7x's 2 TCs
            vmem_limit_bytes=vmem_limit,
        ),
    )(xb, scale2, shift2, w_mat)
    return out.reshape(N, Ho, Wo, Cout)


# ----------------------------------------------------------------------------
# PyTorch-layout (NCHW in / NCHW out) convenience wrapper.  Prefer the NHWC entry
# point end-to-end: the two boundary transposes are extra full HBM passes.
# ----------------------------------------------------------------------------
def downsampling_block(x_nchw, gamma, beta, running_mean, running_var, conv_w,
                       *, eps=1e-5, tile_ho=None, out_dtype=jnp.bfloat16):
    x_nhwc = jnp.transpose(x_nchw, (0, 2, 3, 1))
    out = downsampling_block_nhwc(x_nhwc, gamma, beta, running_mean, running_var,
                                  conv_w, eps=eps, tile_ho=tile_ho, out_dtype=out_dtype)
    return jnp.transpose(out, (0, 3, 1, 2))


# ----------------------------------------------------------------------------
# Pure-JAX f32 reference (faithful to the PyTorch eval-mode forward).
# ----------------------------------------------------------------------------
def reference_nchw(x, gamma, beta, running_mean, running_var, conv_w, eps=1e-5):
    scale = gamma / jnp.sqrt(running_var + eps)
    shift = beta - running_mean * scale
    h = jnp.maximum(x * scale[None, :, None, None] + shift[None, :, None, None], 0.0)
    y = jnp.einsum("nchw,oc->nohw", h, conv_w[:, :, 0, 0])
    yp = jnp.pad(y, ((0, 0), (0, 0), (1, 1), (1, 1)))
    N, Co, Hp, Wp = yp.shape
    Ho, Wo = (Hp - 3) // 2 + 1, (Wp - 3) // 2 + 1
    acc = jnp.zeros((N, Co, Ho, Wo), jnp.float32)
    for dy in range(3):
        for dx in range(3):
            acc = acc + yp[:, :, dy:dy + 2 * Ho:2, dx:dx + 2 * Wo:2]
    return acc / 9.0


if __name__ == "__main__":
    N, Cin, Cout, H, W = 2, 4, 8, 16, 16

    key = jax.random.PRNGKey(0)
    kx, kg, kb, km, kv, kw = jax.random.split(key, 6)

    x_nchw = jax.random.normal(kx, (N, Cin, H, W), jnp.float32)
    gamma = jax.random.uniform(kg, (Cin,), jnp.float32, 0.5, 1.5)
    beta = 0.1 * jax.random.normal(kb, (Cin,), jnp.float32)
    running_mean = 0.1 * jax.random.normal(km, (Cin,), jnp.float32)
    running_var = jax.random.uniform(kv, (Cin,), jnp.float32, 0.5, 1.5)
    conv_w = jax.random.normal(kw, (Cout, Cin, 1, 1), jnp.float32) / jnp.sqrt(Cin)

    ref_nchw = reference_nchw(x_nchw, gamma, beta, running_mean, running_var, conv_w)
    ref_nhwc = jnp.transpose(ref_nchw, (0, 2, 3, 1))

    # Preferred NHWC path; tile_ho=4 forces two row tiles so the H-halo carry is exercised.
    x_nhwc = jnp.transpose(x_nchw, (0, 2, 3, 1))
    out_nhwc = jax.block_until_ready(
        downsampling_block_nhwc(x_nhwc, gamma, beta, running_mean, running_var,
                                conv_w, tile_ho=4))
    assert out_nhwc.shape == (N, H // 2, W // 2, Cout), out_nhwc.shape
    assert out_nhwc.dtype == jnp.bfloat16, out_nhwc.dtype
    assert jnp.allclose(out_nhwc.astype(jnp.float32), ref_nhwc,
                        rtol=3e-2, atol=3e-2), "NHWC mismatch vs reference"

    # PyTorch-layout wrapper with the auto-picked (whole-image) row tile.
    out_nchw = jax.block_until_ready(
        downsampling_block(x_nchw, gamma, beta, running_mean, running_var, conv_w))
    assert out_nchw.shape == (N, Cout, H // 2, W // 2), out_nchw.shape
    assert jnp.allclose(out_nchw.astype(jnp.float32), ref_nchw,
                        rtol=3e-2, atol=3e-2), "NCHW mismatch vs reference"

    print("KERNEL_OK")
</pallas_src>

<mosaic_0001>
module attributes {stable_mosaic.version = 11 : i64} {
  func.func @_fused_kernel(%arg0: i32, %arg1: i32, %arg2: memref<1x8x8x8xbf16, #tpu.memory_space<vmem>>, %arg3: memref<1x1x8xf32, #tpu.memory_space<vmem>>, %arg4: memref<1x1x8xf32, #tpu.memory_space<vmem>>, %arg5: memref<4x8xbf16, #tpu.memory_space<vmem>>, %arg6: memref<1x32x8xbf16, #tpu.memory_space<vmem>>, %arg7: memref<1x8x4xf32, #tpu.memory_space<vmem>>) attributes {dimension_semantics = [#tpu.dimension_semantics<parallel>, #tpu.dimension_semantics<arbitrary>], iteration_bounds = array<i64: 2, 2>, scalar_prefetch = 0 : i64, scratch_operands = 1 : i64, tpu.core_type = #tpu.core_type<tc>, window_params = [{transform_indices = @transform_0, window_bounds = array<i64: 1, 8, 8, 8>}, {pipeline_mode = #tpu.pipeline_mode<synchronous>, transform_indices = @transform_1, window_bounds = array<i64: 1, 1, 8>}, {pipeline_mode = #tpu.pipeline_mode<synchronous>, transform_indices = @transform_2, window_bounds = array<i64: 1, 1, 8>}, {pipeline_mode = #tpu.pipeline_mode<synchronous>, transform_indices = @transform_3, window_bounds = array<i64: 4, 8>}, {transform_indices = @transform_4, window_bounds = array<i64: 1, 32, 8>}]} {
    %c0 = arith.constant 0 : index
    %c0_0 = arith.constant 0 : index
    %c0_1 = arith.constant 0 : index
    %c0_2 = arith.constant 0 : index
    %0 = vector.load %arg2[%c0, %c0_0, %c0_1, %c0_2] : memref<1x8x8x8xbf16, #tpu.memory_space<vmem>>, vector<1x8x8x8xbf16>
    %1 = vector.shape_cast %0 : vector<1x8x8x8xbf16> to vector<8x8x8xbf16>
    %2 = arith.extf %1 : vector<8x8x8xbf16> to vector<8x8x8xf32>
    %c0_3 = arith.constant 0 : index
    %c0_4 = arith.constant 0 : index
    %c0_5 = arith.constant 0 : index
    %3 = vector.load %arg3[%c0_3, %c0_4, %c0_5] : memref<1x1x8xf32, #tpu.memory_space<vmem>>, vector<1x1x8xf32>
    %4 = vector.broadcast %3 : vector<1x1x8xf32> to vector<8x8x8xf32>
    %5 = arith.mulf %2, %4 : vector<8x8x8xf32>
    %c0_6 = arith.constant 0 : index
    %c0_7 = arith.constant 0 : index
    %c0_8 = arith.constant 0 : index
    %6 = vector.load %arg4[%c0_6, %c0_7, %c0_8] : memref<1x1x8xf32, #tpu.memory_space<vmem>>, vector<1x1x8xf32>
    %7 = vector.broadcast %6 : vector<1x1x8xf32> to vector<8x8x8xf32>
    %8 = arith.addf %5, %7 : vector<8x8x8xf32>
    %cst = arith.constant 0.000000e+00 : f32
    %9 = vector.broadcast %cst : f32 to vector<8x8x8xf32>
    %10 = arith.maximumf %8, %9 : vector<8x8x8xf32>
    %11 = vector.extract_strided_slice %10 {offsets = [0, 0, 0], sizes = [8, 8, 4], strides = [1, 1, 1]} : vector<8x8x8xf32> to vector<8x8x4xf32>
    %12 = vector.extract_strided_slice %10 {offsets = [0, 0, 4], sizes = [8, 8, 4], strides = [1, 1, 1]} : vector<8x8x8xf32> to vector<8x8x4xf32>
    %cst_9 = arith.constant 0.000000e+00 : f32
    %13 = vector.broadcast %cst_9 : f32 to vector<8x1x4xf32>
    %14 = vector.extract_strided_slice %12 {offsets = [0, 0, 0], sizes = [8, 7, 4], strides = [1, 1, 1]} : vector<8x8x4xf32> to vector<8x7x4xf32>
    %15 = tpu.concatenate %13, %14 in 1 : vector<8x1x4xf32>, vector<8x7x4xf32> -> vector<8x8x4xf32>
    %16 = arith.addf %11, %12 : vector<8x8x4xf32>
    %17 = arith.addf %16, %15 : vector<8x8x4xf32>
    %18 = vector.shape_cast %17 : vector<8x8x4xf32> to vector<4x2x8x4xf32>
    %19 = vector.extract_strided_slice %18 {offsets = [0, 0, 0, 0], sizes = [4, 1, 8, 4], strides = [1, 1, 1, 1]} : vector<4x2x8x4xf32> to vector<4x1x8x4xf32>
    %20 = vector.shape_cast %19 : vector<4x1x8x4xf32> to vector<4x8x4xf32>
    %21 = vector.extract_strided_slice %18 {offsets = [0, 1, 0, 0], sizes = [4, 1, 8, 4], strides = [1, 1, 1, 1]} : vector<4x2x8x4xf32> to vector<4x1x8x4xf32>
    %22 = vector.shape_cast %21 : vector<4x1x8x4xf32> to vector<4x8x4xf32>
    %c0_i32 = arith.constant 0 : i32
    %23 = arith.cmpi eq, %arg1, %c0_i32 : i32
    %24 = arith.extui %23 : i1 to i32
    %c0_i32_10 = arith.constant 0 : i32
    %25 = arith.cmpi ne, %24, %c0_i32_10 : i32
    scf.if %25 {
      %cst_23 = arith.constant 0.000000e+00 : f32
      %41 = vector.broadcast %cst_23 : f32 to vector<1x8x4xf32>
      %c0_24 = arith.constant 0 : index
      %c0_25 = arith.constant 0 : index
      %c0_26 = arith.constant 0 : index
      %42 = vector.load %arg7[%c0_24, %c0_25, %c0_26] : memref<1x8x4xf32, #tpu.memory_space<vmem>>, vector<1x8x4xf32>
      tpu.vector_store %arg7[%c0_24, %c0_25, %c0_26], %41 {strides = array<i32>} : memref<1x8x4xf32, #tpu.memory_space<vmem>>, vector<1x8x4xf32>,
    } else {
    }
    %c0_11 = arith.constant 0 : index
    %c0_12 = arith.constant 0 : index
    %c0_13 = arith.constant 0 : index
    %26 = vector.load %arg7[%c0_11, %c0_12, %c0_13] : memref<1x8x4xf32, #tpu.memory_space<vmem>>, vector<1x8x4xf32>
    %27 = vector.extract_strided_slice %22 {offsets = [0, 0, 0], sizes = [3, 8, 4], strides = [1, 1, 1]} : vector<4x8x4xf32> to vector<3x8x4xf32>
    %28 = tpu.concatenate %26, %27 in 0 : vector<1x8x4xf32>, vector<3x8x4xf32> -> vector<4x8x4xf32>
    %29 = arith.addf %20, %22 : vector<4x8x4xf32>
    %30 = arith.addf %29, %28 : vector<4x8x4xf32>
    %31 = vector.extract_strided_slice %22 {offsets = [3, 0, 0], sizes = [1, 8, 4], strides = [1, 1, 1]} : vector<4x8x4xf32> to vector<1x8x4xf32>
    %c0_14 = arith.constant 0 : index
    %c0_15 = arith.constant 0 : index
    %c0_16 = arith.constant 0 : index
    %32 = vector.load %arg7[%c0_14, %c0_15, %c0_16] : memref<1x8x4xf32, #tpu.memory_space<vmem>>, vector<1x8x4xf32>
    tpu.vector_store %arg7[%c0_14, %c0_15, %c0_16], %31 {strides = array<i32>} : memref<1x8x4xf32, #tpu.memory_space<vmem>>, vector<1x8x4xf32>,
    %33 = vector.shape_cast %30 : vector<4x8x4xf32> to vector<32x4xf32>
    %34 = arith.truncf %33 : vector<32x4xf32> to vector<32x4xbf16>
    %c0_17 = arith.constant 0 : index
    %c0_18 = arith.constant 0 : index
    %35 = vector.load %arg5[%c0_17, %c0_18] : memref<4x8xbf16, #tpu.memory_space<vmem>>, vector<4x8xbf16>
    %cst_19 = arith.constant dense<0.000000e+00> : vector<32x8xf32>
    %36 = tpu.matmul %34, %35, %cst_19 {dimension_numbers = #tpu.dot_dimension_numbers<[1], [0], [0], [1], [0, 0, 1, 1], [], []>} : vector<32x4xbf16>, vector<4x8xbf16>, vector<32x8xf32> -> vector<32x8xf32>
    %37 = arith.truncf %36 : vector<32x8xf32> to vector<32x8xbf16>
    %c0_20 = arith.constant 0 : index
    %c0_21 = arith.constant 0 : index
    %c0_22 = arith.constant 0 : index
    %38 = vector.load %arg6[%c0_20, %c0_21, %c0_22] : memref<1x32x8xbf16, #tpu.memory_space<vmem>>, vector<1x32x8xbf16>
    %39 = vector.shape_cast %38 : vector<1x32x8xbf16> to vector<32x8xbf16>
    %40 = vector.shape_cast %37 : vector<32x8xbf16> to vector<1x32x8xbf16>
    tpu.vector_store %arg6[%c0_20, %c0_21, %c0_22], %40 {strides = array<i32>} : memref<1x32x8xbf16, #tpu.memory_space<vmem>>, vector<1x32x8xbf16>,
    return
  }
  func.func @transform_0(%arg0: i32, %arg1: i32) -> (i32, i32, i32, i32) {
    %c0_i32 = arith.constant 0 : i32
    %c0_i32_0 = arith.constant 0 : i32
    %c0_i32_1 = arith.constant 0 : i32
    return %arg0, %arg1, %c0_i32, %c0_i32_0 : i32, i32, i32, i32
  }
  func.func @transform_1(%arg0: i32, %arg1: i32) -> (i32, i32, i32) {
    %c0_i32 = arith.constant 0 : i32
    %c0_i32_0 = arith.constant 0 : i32
    %c0_i32_1 = arith.constant 0 : i32
    %c0_i32_2 = arith.constant 0 : i32
    return %c0_i32, %c0_i32_0, %c0_i32_1 : i32, i32, i32
  }
  func.func @transform_2(%arg0: i32, %arg1: i32) -> (i32, i32, i32) {
    %c0_i32 = arith.constant 0 : i32
    %c0_i32_0 = arith.constant 0 : i32
    %c0_i32_1 = arith.constant 0 : i32
    %c0_i32_2 = arith.constant 0 : i32
    return %c0_i32, %c0_i32_0, %c0_i32_1 : i32, i32, i32
  }
  func.func @transform_3(%arg0: i32, %arg1: i32) -> (i32, i32) {
    %c0_i32 = arith.constant 0 : i32
    %c0_i32_0 = arith.constant 0 : i32
    %c0_i32_1 = arith.constant 0 : i32
    return %c0_i32, %c0_i32_0 : i32, i32
  }
  func.func @transform_4(%arg0: i32, %arg1: i32) -> (i32, i32, i32) {
    %c0_i32 = arith.constant 0 : i32
    %c0_i32_0 = arith.constant 0 : i32
    return %arg0, %arg1, %c0_i32 : i32, i32, i32
  }
}

</mosaic_0001>

<llo_original>
// kernel: downsampling_block_nhwc.1
$region0: #{downsampling_block_nhwc.1}
  #allocation0 [shape = 'u32[]', space=smem, size = 0x4, offset = 0x4, fixed_abs, tag = 'smem constant byte address 0x4 - core index']
  #allocation1 [shape = 'u32[144,128]{1,0:T(1,128)}', space=vmem, size = 0x12000, scoped, tag = 'internal scratch']
  #allocation2 [shape = 'f32[1,8,4]{2,1,0:T(8,128)}', space=vmem, size = 0x1000, scoped, tag = 'scratch operand']
  %s0 = inlined_call_operand.vmem [shape: bf16[2,16,8,8], index: 0, kind: input, shape index: {}]
  %s1 = inlined_call_operand.vmem [shape: f32[1,1,8], index: 1, kind: input, shape index: {}]
  %s2 = inlined_call_operand.vmem [shape: f32[1,1,8], index: 2, kind: input, shape index: {}]
  %s3 = inlined_call_operand.vmem [shape: bf16[4,8], index: 3, kind: input, shape index: {}]
  %s4 = inlined_call_operand.hbm [shape: bf16[2,64,8], index: 4, kind: output, shape index: {}]
  %s5 = sld [smem:[#allocation0]]
  $region53: #{downsampling_block_nhwc.1} parent=0
    _
  %s7 = ssub.s32 1, %s5
  %s8 = scalar_select 0, %s7, %s5
  $region1: #{downsampling_block_nhwc.1} parent=0
    #allocation3 [shape = 'u8[16384]{0}', space=vmem, size = 0x4000, scoped, tag = 'output window, operand 0']
    #allocation4 [shape = 's32[2]{0}', space=sflag, size = 0x8, scoped, tag = 'scoped memory for downsampling_block_nhwc.1']
    %9 = vsyncpa [#allocation4], 0
    %s10 = scalar_lea.sflag [#allocation4], 1
    %11 = vsyncpa %s10, 0
    loop: start=0, step=1, limit=6
    $region2: #{downsampling_block_nhwc.1} parent=1 // loop_pre_header
      _
    $region3: #{downsampling_block_nhwc.1} parent=1 // loop_header
      %s13 = sphi 0, %s17
      %p14 = scmp.ge.s32.totalorder %s13, 6
      %s20 = sphi 0, %s32
      %s21 = sphi 0, %s28
      %s22 = sphi 0, %s20
      %s23 = sphi 0, %s21
      %s24 = sphi 0, %s22
      %s25 = sphi 0, %s23
      %s37 = sphi 0, %s39
      %s40 = sphi 0, %s37
      %s41 = sphi 0, %s40
      %s57 = sphi 0, %s41
      %s61 = sphi 0, %s61
      %s63 = sphi 0, %s61
      %s64 = sphi 0, %s63
      %s78 = sphi 0, %s64
      %s82 = sphi 0, %s82
      %s84 = sphi 0, %s82
      %s85 = sphi 0, %s84
      %s99 = sphi 0, %s85
      %s103 = sphi 0, %s103
      %s105 = sphi 0, %s103
      %s106 = sphi 0, %s105
      %s120 = sphi 0, %s106
      %s128 = sphi 0, %s130
      %s131 = sphi 0, %s128
      %s132 = sphi 0, %s131
      %s148 = sphi 0, %s132
    $region4: #{downsampling_block_nhwc.1} parent=1 // loop_header_branch
      %16 = sbr.rel (%p14) target = $region8
    $region5: #{downsampling_block_nhwc.1} parent=1 // loop_body
      %s18 = ssub.s32 %s13, 1
      %s19 = ssub.s32 %s13, 2
      %s26 = sadd.s32 1, %s21
      %p27 = scmp.ge.s32.totalorder %s26, 2
      %s28 = scalar_select %p27, 0, %s26
      %s29 = sadd.s32 1, %s20
      %s30 = scalar_select %p27, %s29, %s20
      %p31 = scmp.ge.s32.totalorder %s30, 2
      %s32 = scalar_select %p31, 0, %s30
      %s33 = ssub.s32 %s20, %s32
      %s34 = ssub.s32 %s21, %s28
      %s35 = sor.u32 %s33, %s34
      %p36 = scmp.eq.s32.totalorder %s35, 0
      %s38 = sadd.s32 %s37, 1
      %s39 = scalar_select %p36, %s37, %s38
      %p42 = pneg %p36
      %p43 = scmp.eq.s32.totalorder %s13, 3
      %p44 = por %p42, %p43
      %p45 = scmp.ne.s32.totalorder %s37, %s40
      %p46 = scmp.eq.s32.totalorder %s13, 0
      %p47 = por %p45, %p46
      %p48 = scmp.ne.s32.totalorder %s37, %s40
      %p49 = scmp.eq.s32.totalorder %s18, 3
      %p50 = por %p48, %p49
      %p51 = scmp.ne.s32.totalorder %s40, %s41
      %p52 = scmp.eq.s32.totalorder %s18, 0
      %p53 = por %p51, %p52
      %p54 = scmp.ne.s32.totalorder %s40, %s41
      %p55 = scmp.eq.s32.totalorder %s19, 3
      %p56 = por %p54, %p55
      %p58 = scmp.ne.s32.totalorder %s41, %s57
      %p59 = scmp.eq.s32.totalorder %s19, 0
      %p60 = por %p58, %p59
      %s62 = sadd.s32 %s61, 1
      %p65 = scmp.eq.s32.totalorder %s13, 3
      %p66 = scmp.ne.s32.totalorder %s61, %s63
      %p67 = scmp.eq.s32.totalorder %s13, 0
      %p68 = por %p66, %p67
      %p69 = scmp.ne.s32.totalorder %s61, %s63
      %p70 = scmp.eq.s32.totalorder %s18, 3
      %p71 = por %p69, %p70
      %p72 = scmp.ne.s32.totalorder %s63, %s64
      %p73 = scmp.eq.s32.totalorder %s18, 0
      %p74 = por %p72, %p73
      %p75 = scmp.ne.s32.totalorder %s63, %s64
      %p76 = scmp.eq.s32.totalorder %s19, 3
      %p77 = por %p75, %p76
      %p79 = scmp.ne.s32.totalorder %s64, %s78
      %p80 = scmp.eq.s32.totalorder %s19, 0
      %p81 = por %p79, %p80
      %s83 = sadd.s32 %s82, 1
      %p86 = scmp.eq.s32.totalorder %s13, 3
      %p87 = scmp.ne.s32.totalorder %s82, %s84
      %p88 = scmp.eq.s32.totalorder %s13, 0
      %p89 = por %p87, %p88
      %p90 = scmp.ne.s32.totalorder %s82, %s84
      %p91 = scmp.eq.s32.totalorder %s18, 3
      %p92 = por %p90, %p91
      %p93 = scmp.ne.s32.totalorder %s84, %s85
      %p94 = scmp.eq.s32.totalorder %s18, 0
      %p95 = por %p93, %p94
      %p96 = scmp.ne.s32.totalorder %s84, %s85
      %p97 = scmp.eq.s32.totalorder %s19, 3
      %p98 = por %p96, %p97
      %p100 = scmp.ne.s32.totalorder %s85, %s99
      %p101 = scmp.eq.s32.totalorder %s19, 0
      %p102 = por %p100, %p101
      %s104 = sadd.s32 %s103, 1
      %p107 = scmp.eq.s32.totalorder %s13, 3
      %p108 = scmp.ne.s32.totalorder %s103, %s105
      %p109 = scmp.eq.s32.totalorder %s13, 0
      %p110 = por %p108, %p109
      %p111 = scmp.ne.s32.totalorder %s103, %s105
      %p112 = scmp.eq.s32.totalorder %s18, 3
      %p113 = por %p111, %p112
      %p114 = scmp.ne.s32.totalorder %s105, %s106
      %p115 = scmp.eq.s32.totalorder %s18, 0
      %p116 = por %p114, %p115
      %p117 = scmp.ne.s32.totalorder %s105, %s106
      %p118 = scmp.eq.s32.totalorder %s19, 3
      %p119 = por %p117, %p118
      %p121 = scmp.ne.s32.totalorder %s106, %s120
      %p122 = scmp.eq.s32.totalorder %s19, 0
      %p123 = por %p121, %p122
      %s124 = ssub.s32 %s20, %s32
      %s125 = ssub.s32 %s21, %s28
      %s126 = sor.u32 %s124, %s125
      %p127 = scmp.eq.s32.totalorder %s126, 0
      %s129 = sadd.s32 %s128, 1
      %s130 = scalar_select %p127, %s128, %s129
      %p133 = pneg %p127
      %p134 = scmp.eq.s32.totalorder %s13, 3
      %p135 = por %p133, %p134
      %p136 = scmp.ne.s32.totalorder %s128, %s131
      %p137 = scmp.eq.s32.totalorder %s13, 0
      %p138 = por %p136, %p137
      %p139 = scmp.ne.s32.totalorder %s128, %s131
      %p140 = scmp.eq.s32.totalorder %s18, 3
      %p141 = por %p139, %p140
      %p142 = scmp.ne.s32.totalorder %s131, %s132
      %p143 = scmp.eq.s32.totalorder %s18, 0
      %p144 = por %p142, %p143
      %p145 = scmp.ne.s32.totalorder %s131, %s132
      %p146 = scmp.eq.s32.totalorder %s19, 3
      %p147 = por %p145, %p146
      %p149 = scmp.ne.s32.totalorder %s132, %s148
      %p150 = scmp.eq.s32.totalorder %s19, 0
      %p151 = por %p149, %p150
      %p152 = scmp.le.s32.totalorder 1, %s13
      %p153 = scmp.lt.s32.totalorder %s13, 5
      %p154 = pnand %p152, %p153
      %p155 = pneg %p154
      // Predicated region
      $region9: #{downsampling_block_nhwc.1} parent=5 // pred_check
        _
      $region10: #{downsampling_block_nhwc.1} parent=5 // pred_check_branch
        %157 = sbr.rel (%p154) target = $region12
      $region11: #{downsampling_block_nhwc.1} parent=5 // pred_region
        %s158 = ssub.s32 %s13, 1
        // Predicated region
        $region13: #{downsampling_block_nhwc.1} parent=11 // pred_check
          %p159 = pneg %p74
        $region14: #{downsampling_block_nhwc.1} parent=11 // pred_check_branch
          %161 = sbr.rel (%p159) target = $region16
        $region15: #{downsampling_block_nhwc.1} parent=11 // pred_region
          _
        $region16: #{downsampling_block_nhwc.1} parent=11 // pred_fallthru
          _
        // Predicated region
        $region17: #{downsampling_block_nhwc.1} parent=11 // pred_check
          %p162 = pneg %p95
        $region18: #{downsampling_block_nhwc.1} parent=11 // pred_check_branch
          %164 = sbr.rel (%p162) target = $region20
        $region19: #{downsampling_block_nhwc.1} parent=11 // pred_region
          _
        $region20: #{downsampling_block_nhwc.1} parent=11 // pred_fallthru
          _
        // Predicated region
        $region21: #{downsampling_block_nhwc.1} parent=11 // pred_check
          %p165 = pneg %p116
        $region22: #{downsampling_block_nhwc.1} parent=11 // pred_check_branch
          %167 = sbr.rel (%p165) target = $region24
        $region23: #{downsampling_block_nhwc.1} parent=11 // pred_region
          _
        $region24: #{downsampling_block_nhwc.1} parent=11 // pred_fallthru
          _
      $region12: #{downsampling_block_nhwc.1} parent=5 // pred_fallthru
        _
      %p168 = scmp.lt.s32.totalorder %s13, 4
      // Predicated region
      $region25: #{downsampling_block_nhwc.1} parent=5 // pred_check
        %p169 = pneg %p168
      $region26: #{downsampling_block_nhwc.1} parent=5 // pred_check_branch
        %171 = sbr.rel (%p169) target = $region28
      $region27: #{downsampling_block_nhwc.1} parent=5 // pred_region
        // Predicated region
        $region29: #{downsampling_block_nhwc.1} parent=27 // pred_check
          %p172 = pneg %p47
        $region30: #{downsampling_block_nhwc.1} parent=27 // pred_check_branch
          %174 = sbr.rel (%p172) target = $region32
        $region31: #{downsampling_block_nhwc.1} parent=27 // pred_region
          %s175 = smul.u32 8, %s21
          %p176 = scmp.lt.s32.totalorder %s20, 1
          %s177 = scalar_select %p176, %s20, 1
          %p178 = scmp.lt.s32.totalorder %s175, 15
          %s179 = scalar_select %p178, %s175, 15
          %s180 = smul.addr %s177, 16
          %s181 = sadd.s32 %s179, %s180
          %s182 = smul.addr %s181, 4
          %s183 = scalar_lea.vmem %s0, %s182
          %s184 = smul.u32 8, %s21
        $region32: #{downsampling_block_nhwc.1} parent=27 // pred_fallthru
          _
      $region28: #{downsampling_block_nhwc.1} parent=5 // pred_fallthru
        _
      %p185 = scmp.le.s32.totalorder 1, %s13
      %p186 = scmp.lt.s32.totalorder %s13, 5
      %p187 = pnand %p185, %p186
      %p188 = pneg %p187
      // Predicated region
      $region33: #{downsampling_block_nhwc.1} parent=5 // pred_check
        _
      $region34: #{downsampling_block_nhwc.1} parent=5 // pred_check_branch
        %190 = sbr.rel (%p187) target = $region36
      $region35: #{downsampling_block_nhwc.1} parent=5 // pred_region
        %s191 = ssub.s32 %s13, 1
        %s192 = smul.u32 8, %s23
        %p193 = scmp.lt.s32.totalorder %s22, 1
        %s194 = scalar_select %p193, %s22, 1
        %p195 = scmp.lt.s32.totalorder %s192, 15
        %s196 = scalar_select %p195, %s192, 15
        %s197 = smul.addr %s194, 16
        %s198 = sadd.s32 %s196, %s197
        %s199 = smul.addr %s198, 4
        %s200 = scalar_lea.vmem %s0, %s199
        %p201 = pneg %p53
        %p202 = pneg %p50
        %p203 = pneg %p74
        %p204 = pneg %p71
        %p205 = pneg %p95
        %p206 = pneg %p92
        %p207 = pneg %p116
        %p208 = pneg %p113
        %p209 = pneg %p144
        %p210 = pneg %p141
        %s211 = sand.u32 %s131, 1
        %s212 = scalar_lea.sflag [#allocation4], %s211
        %s213 = sand.u32 %s131, 1
        %s214 = smul.addr %s213, 16
        %s215 = scalar_lea.vmem [#allocation3], %s214
        %s216 = smul.u32 8, %s23
        %p217 = scmp.lt.s32.totalorder %s22, 1
        %s218 = scalar_select %p217, %s22, 1
        %p219 = scmp.lt.s32.totalorder %s216, 15
        %s220 = scalar_select %p219, %s216, 15
        %s221 = smul.addr %s218, 16
        %s222 = sadd.s32 %s220, %s221
        %s223 = smul.addr %s222, 4
        %s224 = scalar_lea.vmem %s0, %s223
        %s225 = smul.u32 8, %s23
        %s226 = smul.u32 4, %s23
        %v228 = vld [vmem:[%s224] sm:$0xf]
        %v229 = vld [vmem:[%s224 + $0x4] sm:$0xf]
        %v230 = vld [vmem:[%s224 + $0x8] sm:$0xf]
        %v231 = vld [vmem:[%s224 + $0xc] sm:$0xf]
        %v232 = vld [vmem:[%s224 + $0x10] sm:$0xf]
        %v233 = vld [vmem:[%s224 + $0x14] sm:$0xf]
        %v234 = vld [vmem:[%s224 + $0x18] sm:$0xf]
        %v235 = vld [vmem:[%s224 + $0x1c] sm:$0xf]
        %v236 = vunpack.c.l.bf16 %v228
        %v237 = vunpack.c.l.bf16 %v229
        %v238 = vunpack.c.l.bf16 %v230
        %v239 = vunpack.c.l.bf16 %v231
        %v240 = vunpack.c.l.bf16 %v232
        %v241 = vunpack.c.l.bf16 %v233
        %v242 = vunpack.c.l.bf16 %v234
        %v243 = vunpack.c.l.bf16 %v235
        %v244 = vld [vmem:[%s1] sm:$0x1]
        %v246 = vlaneseq
        %v247 = vshrl.u32 %v246, 7
        %v248 = vsub.s32 0, %v247
        %v249 = vrot.slane %v244, %v248
        %v251 = vmul.f32 %v236, %v249
        %v252 = vmul.f32 %v237, %v249
        %v253 = vmul.f32 %v238, %v249
        %v254 = vmul.f32 %v239, %v249
        %v255 = vmul.f32 %v240, %v249
        %v256 = vmul.f32 %v241, %v249
        %v257 = vmul.f32 %v242, %v249
        %v258 = vmul.f32 %v243, %v249
        %v259 = vld [vmem:[%s2] sm:$0x1]
        %v261 = vlaneseq
        %v262 = vshrl.u32 %v261, 7
        %v263 = vsub.s32 0, %v262
        %v264 = vrot.slane %v259, %v263
        %v266 = vadd.f32 %v251, %v264
        %v267 = vadd.f32 %v252, %v264
        %v268 = vadd.f32 %v253, %v264
        %v269 = vadd.f32 %v254, %v264
        %v270 = vadd.f32 %v255, %v264
        %v271 = vadd.f32 %v256, %v264
        %v272 = vadd.f32 %v257, %v264
        %v273 = vadd.f32 %v258, %v264
        %v274 = vmax.f32 %v266, 0.0
        %v275 = vmax.f32 %v267, 0.0
        %v276 = vmax.f32 %v268, 0.0
        %v277 = vmax.f32 %v269, 0.0
        %v278 = vmax.f32 %v270, 0.0
        %v279 = vmax.f32 %v271, 0.0
        %v280 = vmax.f32 %v272, 0.0
        %v281 = vmax.f32 %v273, 0.0
        %v290 = vrot.slane %v274, 7
        %v291 = vrot.slane %v275, 7
        %v292 = vrot.slane %v276, 7
        %v293 = vrot.slane %v277, 7
        %v294 = vrot.slane %v278, 7
        %v295 = vrot.slane %v279, 7
        %v296 = vrot.slane %v280, 7
        %v297 = vrot.slane %v281, 7
        %298 = vrot.lane.b32.xlu0 %v290, 124
        %v299 = vpop.permute.xlu0 %298
        %300 = vrot.lane.b32.xlu0 %v291, 124
        %v301 = vpop.permute.xlu0 %300
        %302 = vrot.lane.b32.xlu0 %v292, 124
        %v303 = vpop.permute.xlu0 %302
        %304 = vrot.lane.b32.xlu0 %v293, 124
        %v305 = vpop.permute.xlu0 %304
        %306 = vrot.lane.b32.xlu0 %v294, 124
        %v307 = vpop.permute.xlu0 %306
        %308 = vrot.lane.b32.xlu0 %v295, 124
        %v309 = vpop.permute.xlu0 %308
        %310 = vrot.lane.b32.xlu0 %v296, 124
        %v311 = vpop.permute.xlu0 %310
        %312 = vrot.lane.b32.xlu0 %v297, 124
        %v313 = vpop.permute.xlu0 %312
        %vm322 = vcmask 1040384
        %v323 = vsel %vm322, 0.0, %v299
        %v324 = vsel %vm322, 0.0, %v301
        %v325 = vsel %vm322, 0.0, %v303
        %v326 = vsel %vm322, 0.0, %v305
        %v327 = vsel %vm322, 0.0, %v307
        %v328 = vsel %vm322, 0.0, %v309
        %v329 = vsel %vm322, 0.0, %v311
        %v330 = vsel %vm322, 0.0, %v313
        %331 = vrot.lane.b32.xlu0 %v274, 124
        %v332 = vpop.permute.xlu0 %331
        %333 = vrot.lane.b32.xlu0 %v275, 124
        %v334 = vpop.permute.xlu0 %333
        %335 = vrot.lane.b32.xlu0 %v276, 124
        %v336 = vpop.permute.xlu0 %335
        %337 = vrot.lane.b32.xlu0 %v277, 124
        %v338 = vpop.permute.xlu0 %337
        %339 = vrot.lane.b32.xlu0 %v278, 124
        %v340 = vpop.permute.xlu0 %339
        %341 = vrot.lane.b32.xlu0 %v279, 124
        %v342 = vpop.permute.xlu0 %341
        %343 = vrot.lane.b32.xlu0 %v280, 124
        %v344 = vpop.permute.xlu0 %343
        %345 = vrot.lane.b32.xlu0 %v281, 124
        %v346 = vpop.permute.xlu0 %345
        %v355 = vadd.f32 %v274, %v332
        %v356 = vadd.f32 %v275, %v334
        %v357 = vadd.f32 %v276, %v336
        %v358 = vadd.f32 %v277, %v338
        %v359 = vadd.f32 %v278, %v340
        %v360 = vadd.f32 %v279, %v342
        %v361 = vadd.f32 %v280, %v344
        %v362 = vadd.f32 %v281, %v346
        %v363 = vadd.f32 %v355, %v323
        %v364 = vadd.f32 %v356, %v324
        %v365 = vadd.f32 %v357, %v325
        %v366 = vadd.f32 %v358, %v326
        %v367 = vadd.f32 %v359, %v327
        %v368 = vadd.f32 %v360, %v328
        %v369 = vadd.f32 %v361, %v329
        %v370 = vadd.f32 %v362, %v330
        %p371 = scmp.eq.s32.totalorder %s23, 0
        // Predicated region
        $region37: #{downsampling_block_nhwc.1} parent=35 // pred_check
          %p372 = pneg %p371
        $region38: #{downsampling_block_nhwc.1} parent=35 // pred_check_branch
          %374 = sbr.rel (%p372) target = $region40
        $region39: #{downsampling_block_nhwc.1} parent=35 // pred_region
          %vm375 = vcmask 31744
          %376 = vst.msk [vmem:[#allocation2] sm:$0xff] %vm375, 0.0
        $region40: #{downsampling_block_nhwc.1} parent=35 // pred_fallthru
          _
        %v377 = vld [vmem:[#allocation2] sm:$0xff]
        %v378 = vadd.f32 %v363, %v364
        %v379 = vadd.f32 %v365, %v366
        %v380 = vadd.f32 %v367, %v368
        %v381 = vadd.f32 %v369, %v370
        %v382 = vadd.f32 %v378, %v377
        %v383 = vadd.f32 %v379, %v364
        %v384 = vadd.f32 %v380, %v366
        %v385 = vadd.f32 %v381, %v368
        %vm386 = vcmask 31744
        %387 = vst.msk [vmem:[#allocation2] sm:$0xff] %vm386, %v370
        %v388 = vpack.c.bf16 %v383, %v382
        %v389 = vpack.c.bf16 %v385, %v384
        %v390 = vld [vmem:[%s3] sm:$0x3]
        %v392 = vsel %vm386, %v388, 0
        %v395 = vsel %vm386, %v389, 0
        %vm397 = vcmask 1041408
        %v399 = vsel %vm397, %v390, 0
        %401 = vmatprep.subr.bf16.mxu0 0
        %402 = vmatpush1.bf16.msra.mxu0 %v399
        %403 = vmatprep.subr.bf16.mxu0 0
        %404 = vmatpush1.bf16.msra.mxu0 0
        %405 = vmatprep.subr.bf16.mxu0 0
        %406 = vmatpush1.bf16.msra.mxu0 0
        %407 = vmatprep.subr.bf16.mxu0 0
        %408 = vmatpush1.bf16.msra.mxu0 0
        %409 = vmatprep.subr.bf16.mxu0 0
        %410 = vmatpush1.bf16.msra.mxu0 0
        %411 = vmatprep.subr.bf16.mxu0 0
        %412 = vmatpush1.bf16.msra.mxu0 0
        %413 = vmatprep.subr.bf16.mxu0 0
        %414 = vmatpush1.bf16.msra.mxu0 0
        %415 = vmatprep.subr.bf16.mxu0 0
        %416 = vmatpush1.bf16.msra.mxu0 0
        %417 = vmatprep.subr.bf16.mxu0 0
        %418 = vmatpush1.bf16.msra.mxu0 0
        %419 = vmatprep.subr.bf16.mxu0 0
        %420 = vmatpush1.bf16.msra.mxu0 0
        %421 = vmatprep.subr.bf16.mxu0 0
        %422 = vmatpush1.bf16.msra.mxu0 0
        %423 = vmatprep.subr.bf16.mxu0 0
        %424 = vmatpush1.bf16.msra.mxu0 0
        %425 = vmatprep.subr.bf16.mxu0 0
        %426 = vmatpush1.bf16.msra.mxu0 0
        %427 = vmatprep.subr.bf16.mxu0 0
        %428 = vmatpush1.bf16.msra.mxu0 0
        %429 = vmatprep.subr.bf16.mxu0 0
        %430 = vmatpush1.bf16.msra.mxu0 0
        %431 = vmatprep.subr.bf16.mxu0 0
        %432 = vmatpush1.bf16.msra.mxu0 0
        %433 = vmatprep.mubr.bf16.mxu0 0
        %434 = vmatmul.mubr.bf16.gmra.mrb[0].mxu0 %v392
        %v435 = vpop.f32.mrb[0].mxu0
        %v436 = vadd.f32 0.0, %v435
        %v437 = vpop.f32.mrb[0].mxu0
        %v438 = vpop.f32.mrb[0].mxu0
        %v439 = vadd.f32 0.0, %v438
        %v440 = vpop.f32.mrb[0].mxu0
        %441 = vmatprep.mubr.bf16.mxu0 0
        %442 = vmatmul.mubr.bf16.gmra.mrb[0].mxu0 %v395
        %v443 = vpop.f32.mrb[0].mxu0
        %v444 = vadd.f32 0.0, %v443
        %v445 = vpop.f32.mrb[0].mxu0
        %v446 = vpop.f32.mrb[0].mxu0
        %v447 = vadd.f32 0.0, %v446
        %v448 = vpop.f32.mrb[0].mxu0
        %449 = vdwg.mxu0
        %v450 = vpack.c.bf16 %v439, %v436
        %v451 = vpack.c.bf16 %v447, %v444
        %v454 = vunpack.c.l.b16 %v450
        %v455 = vunpack.c.h.b16 %v450
        %v456 = vunpack.c.l.b16 %v451
        %v457 = vunpack.c.h.b16 %v451
        %v458 = vpack.c.b16 %v454, %v454
        %v459 = vpack.c.b16 %v455, %v455
        %v460 = vpack.c.b16 %v456, %v456
        %v461 = vpack.c.b16 %v457, %v457
        %vm466 = vcmask 60416
        %467 = vst.msk [vmem:[%s215] sm:$0xf] %vm466, %v458
        %468 = vst.msk [vmem:[%s215 + $0x4] sm:$0xf] %vm466, %v459
        %469 = vst.msk [vmem:[%s215 + $0x8] sm:$0xf] %vm466, %v460
        %470 = vst.msk [vmem:[%s215 + $0xc] sm:$0xf] %vm466, %v461
        %s471 = sand.u32 %s131, 1
        %s472 = scalar_lea.sflag [#allocation4], %s471
        %s473 = sand.u32 %s131, 1
        %s474 = smul.addr %s473, 16
        %s475 = scalar_lea.vmem [#allocation3], %s474
        // Predicated region
        $region41: #{downsampling_block_nhwc.1} parent=35 // pred_check
          %p476 = pneg %p141
        $region42: #{downsampling_block_nhwc.1} parent=35 // pred_check_branch
          %478 = sbr.rel (%p476) target = $region44
        $region43: #{downsampling_block_nhwc.1} parent=35 // pred_region
          %s479 = smul.u32 4, %s23
          %s481 = ssub.s32 256, 256
          %482 = vsyncadd %s472, %s481
          %s483 = smul.addr %s22, 8
          %s484 = sadd.s32 %s479, %s483
          %s485 = smul.addr %s484, 64
          %s486 = scalar_lea.hbm %s4, %s485
          %s487 = sshll.u32 %s475, 4
          %s488 = int_to_ptr.vmem [resolvable:$true] %s487
          %493 = dma.vmem_to_hbm [thread:$0]  %s488, 256, %s486, %s472, 64, 64, 4
        $region44: #{downsampling_block_nhwc.1} parent=35 // pred_fallthru
          _
      $region36: #{downsampling_block_nhwc.1} parent=5 // pred_fallthru
        _
      %p494 = scmp.le.s32.totalorder 2, %s13
      // Predicated region
      $region45: #{downsampling_block_nhwc.1} parent=5 // pred_check
        %p495 = pneg %p494
      $region46: #{downsampling_block_nhwc.1} parent=5 // pred_check_branch
        %497 = sbr.rel (%p495) target = $region48
      $region47: #{downsampling_block_nhwc.1} parent=5 // pred_region
        %s498 = ssub.s32 %s13, 2
        // Predicated region
        $region49: #{downsampling_block_nhwc.1} parent=47 // pred_check
          %p499 = pneg %p147
        $region50: #{downsampling_block_nhwc.1} parent=47 // pred_check_branch
          %501 = sbr.rel (%p499) target = $region52
        $region51: #{downsampling_block_nhwc.1} parent=47 // pred_region
          %s502 = sand.u32 %s132, 1
          %s503 = scalar_lea.sflag [#allocation4], %s502
          %s504 = sand.u32 %s132, 1
          %s505 = smul.addr %s504, 16
          %s506 = scalar_lea.vmem [#allocation3], %s505
          %507 = dma.done %s503, 256
        $region52: #{downsampling_block_nhwc.1} parent=47 // pred_fallthru
          _
      $region48: #{downsampling_block_nhwc.1} parent=5 // pred_fallthru
        _
    $region6: #{downsampling_block_nhwc.1} parent=1 // loop_footer
      %s17 = sadd.s32 1, %s13
    $region7: #{downsampling_block_nhwc.1} parent=1 // loop_footer_branch
      %12 = sbr.rel target = $region3
    $region8: #{downsampling_block_nhwc.1} parent=1 // loop_exit
      _
    %508 = vsyncpa [#allocation4], 1
    %s509 = scalar_lea.sflag [#allocation4], 1
    %510 = vsyncpa %s509, 1

</llo_original>
